<compile_context>
chip_gen: v5e
topology: v5e:2x2
jax: 0.10.0
libtpu: 0.0.40
codegen_flags: <defaults>
</compile_context>

<pallas_src>
import math
from functools import partial

import jax
import jax.numpy as jnp
from jax import lax
from jax.experimental import pallas as pl
from jax.experimental.pallas import tpu as pltpu

_LANES = 128


# ---------------------------------------------------------------------------
# helpers
# ---------------------------------------------------------------------------
def _cdiv(a, b):
    return -(-a // b)


def _round_up(n, m):
    return _cdiv(n, m) * m


def _sublane_align(dtype):
    # native sublane tile: 8 for f32, 16 for bf16, 32 for int8/fp8
    return max(8, 32 // jnp.dtype(dtype).itemsize)


def _gelu(x, approx=False):
    if approx:
        # tanh approximation -> native EUP transcendental (otherwise-idle
        # bundle slot).  Recommended on v6e/v7x once tiles are large and the
        # exact-erf VALU polynomial becomes the binding slot.
        c = math.sqrt(2.0 / math.pi)
        return 0.5 * x * (1.0 + jnp.tanh(c * (x + 0.044715 * x * x * x)))
    # PyTorch nn.GELU() default = exact erf-based GELU.
    return 0.5 * x * (1.0 + lax.erf(x * (1.0 / math.sqrt(2.0))))


def _block_diag(w, reps):
    """[a, b] -> [reps*a, reps*b] block diagonal (reps copies of w)."""
    if reps == 1:
        return w
    a, b = w.shape
    eye = jnp.eye(reps, dtype=w.dtype)
    out = eye[:, None, :, None] * w[None, :, None, :]
    return out.reshape(reps * a, reps * b)


# ---------------------------------------------------------------------------
# kernel
# ---------------------------------------------------------------------------
def _mlp_kernel(x_ref, w1_ref, b1_ref, w2_ref, b2_ref, o_ref, *,
                approx_gelu, elem_dtype):
    # x_ref:  [tm/pack, pack*C]  lane-dense tile of packed rows (streamed)
    # w1_ref: [pack*C, pack*F]   block-diagonal c_fc weight   (resident)
    # b1_ref: [1, pack*F]        f32 bias (tiled per packed slot)
    # w2_ref: [pack*F, pack*C]   block-diagonal c_proj weight (resident)
    # b2_ref: [1, pack*C]        f32 bias
    x = x_ref[...]
    h = jnp.dot(x, w1_ref[...], preferred_element_type=jnp.float32)
    if jnp.dtype(elem_dtype) != jnp.dtype(jnp.float32):
        # bf16 elementwise path (v6e/v7x have native bf16 VALU/EUP).
        h = h.astype(elem_dtype)
    h = _gelu(h + b1_ref[...].astype(h.dtype), approx_gelu)
    y = jnp.dot(h.astype(w2_ref.dtype), w2_ref[...],
                preferred_element_type=jnp.float32)
    y = y + b2_ref[...]
    # dropout(p = 0.0) == identity
    o_ref[...] = y.astype(o_ref.dtype)      # full-lane (unmasked) store


# ---------------------------------------------------------------------------
# one-time parameter packing (hoisted out of the per-call forward)
# ---------------------------------------------------------------------------
def pack_mlp_params(w_fc, b_fc, w_proj, b_proj, *, storage_dtype=jnp.bfloat16):
    """Precompute the lane-packed / block-diagonal weight slabs ONCE.

    Under jit the pack^2-inflated block-diagonal weights would otherwise be
    re-materialized in HBM every forward call.  storage_dtype defaults to
    bf16 (halves HBM bytes on the mem-bound path, avoids multi-pass f32 MXU
    on v5e); both kernel matmuls still accumulate in f32.
    Torch layouts: w_fc [F, C], b_fc [F], w_proj [C, F], b_proj [C].
    """
    F_dim, C = w_fc.shape
    assert w_proj.shape == (C, F_dim)
    assert b_fc.shape == (F_dim,) and b_proj.shape == (C,)
    storage_dtype = jnp.dtype(storage_dtype)

    pack = _LANES // C if (C < _LANES and _LANES % C == 0) else 1
    Cp, Fp = pack * C, pack * F_dim

    w1 = _block_diag(w_fc.T.astype(jnp.float32), pack).astype(storage_dtype)
    w2 = _block_diag(w_proj.T.astype(jnp.float32), pack).astype(storage_dtype)
    b1 = jnp.tile(b_fc.reshape(1, F_dim).astype(jnp.float32), (1, pack))   # [1, Fp]
    b2 = jnp.tile(b_proj.reshape(1, C).astype(jnp.float32), (1, pack))     # [1, Cp]
    return dict(w1=w1, b1=b1, w2=w2, b2=b2, C=C, F=F_dim, pack=pack,
                storage_dtype=storage_dtype)


# ---------------------------------------------------------------------------
# spec / tiling helpers
# ---------------------------------------------------------------------------
def _resident_spec(shape, single_buffer):
    """BlockSpec for a grid-invariant (resident) operand.  single_buffer drops
    the second pipeline buffer (constant index_map => pure VMEM waste);
    decisive at nanoGPT scale on v7x's 64 MiB/TC."""
    index_map = lambda i: (0,) * len(shape)
    if single_buffer:
        try:
            return pl.BlockSpec(shape, index_map, pipeline_mode=pl.Buffered(1))
        except TypeError:       # jax without BlockSpec(pipeline_mode=...)
            pass
    return pl.BlockSpec(shape, index_map)


def _stream_spec(shape, buffer_count):
    index_map = lambda i: (i, 0)
    if buffer_count != 2:
        try:
            return pl.BlockSpec(shape, index_map,
                                pipeline_mode=pl.Buffered(buffer_count))
        except TypeError:
            pass
    return pl.BlockSpec(shape, index_map)


def _choose_tm(M, row_align, tm_target=8192, min_split_rows=1024):
    """Pick a large row tile (amortize per-grid-step overhead; the kernel is
    step-overhead bound at small C) and prefer an even number of grid steps
    (>= 2) so v7x's two TensorCores split the 'parallel' axis evenly, as long
    as per-step tiles stay >= min_split_rows."""
    full = _round_up(M, row_align)
    tm = min(_round_up(tm_target, row_align), full)
    steps = _cdiv(full, tm)
    if steps % 2 == 1:
        tm_even = _round_up(_cdiv(full, steps + 1), row_align)
        if tm_even >= max(min_split_rows, row_align) and _cdiv(full, tm_even) >= 2:
            tm = tm_even
    return tm


def _derive_vmem_limit(tile_rows, Cp, Fp, in_bytes, out_bytes, w_bytes,
                       w_buffers, x_buffers):
    """Tight scoped-VMEM limit derived from the actual buffers (plus slack)
    instead of a blanket 48 MiB."""
    est = (tile_rows * Cp * in_bytes * x_buffers            # streamed x tiles
           + tile_rows * Cp * out_bytes * 2                 # streamed out tiles
           + (2 * Cp * Fp * w_bytes + (Fp + Cp) * 4) * w_buffers   # weights+bias
           + tile_rows * Fp * (4 + w_bytes))                # f32 h + cast copy
    return int(min(56 * 2**20, max(24 * 2**20, 2 * est + 4 * 2**20)))


# ---------------------------------------------------------------------------
# forward
# ---------------------------------------------------------------------------
def mlp_forward_packed(x, params, *, tm=None, out_dtype=None,
                       approx_gelu=False, elementwise_dtype=None,
                       single_buffer_weights=None, x_buffer_count=2):
    """x: [B, T, C]; params from pack_mlp_params.  Returns [B, T, C].

    approx_gelu=True uses tanh GELU (EUP path, recommended on v6e/v7x);
    default False keeps exact erf = PyTorch nn.GELU().  elementwise_dtype=
    jnp.bfloat16 halves VALU/EUP cycles on v6e/v7x (keep None/f32 on v5e).
    """
    B, T, C = x.shape
    assert C == params["C"], "channel mismatch vs packed params"
    F_dim, pack = params["F"], params["pack"]
    storage_dtype = params["storage_dtype"]
    Cp, Fp = pack * C, pack * F_dim
    M = B * T

    out_dtype = x.dtype if out_dtype is None else jnp.dtype(out_dtype)
    elem_dtype = (jnp.float32 if elementwise_dtype is None
                  else jnp.dtype(elementwise_dtype))

    row_align = _sublane_align(storage_dtype) * pack
    if tm is None:
        tm = _choose_tm(M, row_align)
    else:
        tm = max(row_align, _round_up(tm, row_align))
    M_pad = _round_up(M, tm)
    grid = (M_pad // tm,)
    tile_rows = tm // pack            # rows of the lane-dense (packed) view

    # Cheap per-call layout plumbing (the heavy weight packing is hoisted).
    x2d = x.reshape(M, C)
    if M_pad != M:
        x2d = jnp.pad(x2d, ((0, M_pad - M), (0, 0)))     # padded tail, sliced off
    x_ld = x2d.astype(storage_dtype).reshape(M_pad // pack, Cp)

    w_bytes = jnp.dtype(storage_dtype).itemsize
    in_bytes = w_bytes
    out_bytes = jnp.dtype(out_dtype).itemsize

    # Single-buffer resident weights once they are big enough to matter.
    if single_buffer_weights is None:
        single_buffer_weights = (2 * Cp * Fp * w_bytes) > (4 << 20)
    w_buffers = 1 if single_buffer_weights else 2

    cost = pl.CostEstimate(
        flops=4 * M_pad * Cp * F_dim,                     # both (packed) matmuls
        transcendentals=M_pad * F_dim,                    # erf / tanh
        bytes_accessed=(M_pad * C * (in_bytes + out_bytes)
                        + 2 * Cp * Fp * w_bytes + (Fp + Cp) * 4),
    )

    kernel = partial(_mlp_kernel, approx_gelu=approx_gelu, elem_dtype=elem_dtype)

    out_ld = pl.pallas_call(
        kernel,
        out_shape=jax.ShapeDtypeStruct((M_pad // pack, Cp), out_dtype),
        grid_spec=pltpu.PrefetchScalarGridSpec(
            num_scalar_prefetch=0,
            grid=grid,
            in_specs=[
                _stream_spec((tile_rows, Cp), x_buffer_count),      # x tile
                _resident_spec((Cp, Fp), single_buffer_weights),    # W1
                _resident_spec((1, Fp), single_buffer_weights),     # b1
                _resident_spec((Fp, Cp), single_buffer_weights),    # W2
                _resident_spec((1, Cp), single_buffer_weights),     # b2
            ],
            out_specs=pl.BlockSpec((tile_rows, Cp), lambda i: (i, 0)),
        ),
        compiler_params=pltpu.CompilerParams(
            dimension_semantics=("parallel",),            # v7x 2-TC sharding
            vmem_limit_bytes=_derive_vmem_limit(
                tile_rows, Cp, Fp, in_bytes, out_bytes, w_bytes,
                w_buffers, x_buffer_count),
        ),
        cost_estimate=cost,
    )(x_ld, params["w1"], params["b1"], params["w2"], params["b2"])

    return out_ld.reshape(M_pad, C)[:M].reshape(B, T, C)


def mlp_forward(x, w_fc, b_fc, w_proj, b_proj, *,
                storage_dtype=jnp.bfloat16, **kw):
    """Convenience one-shot wrapper (packs weights per call; prefer
    pack_mlp_params + mlp_forward_packed when calling repeatedly)."""
    return mlp_forward_packed(
        x, pack_mlp_params(w_fc, b_fc, w_proj, b_proj,
                           storage_dtype=storage_dtype), **kw)


def mlp_reference(x, w_fc, b_fc, w_proj, b_proj, approx_gelu=False):
    h = jnp.einsum("btc,fc->btf", x, w_fc) + b_fc
    h = _gelu(h, approx_gelu)
    return jnp.einsum("btf,cf->btc", h, w_proj) + b_proj


if __name__ == "__main__":
    # Synthetic config matching the module: n_embd=32, ffw_dim=64, bias=True,
    # dropout=0.0.
    B, T, C, F_dim = 2, 8, 32, 64

    key = jax.random.PRNGKey(0)
    k_x, k_w1, k_b1, k_w2, k_b2, k_x2, k_x3 = jax.random.split(key, 7)

    x = jax.random.normal(k_x, (B, T, C), dtype=jnp.float32)
    w_fc = jax.random.normal(k_w1, (F_dim, C), dtype=jnp.float32) / math.sqrt(C)
    b_fc = jax.random.normal(k_b1, (F_dim,), dtype=jnp.float32) * 0.01
    w_proj = jax.random.normal(k_w2, (C, F_dim), dtype=jnp.float32) / math.sqrt(F_dim)
    b_proj = jax.random.normal(k_b2, (C,), dtype=jnp.float32) * 0.01

    y_ref = mlp_reference(x, w_fc, b_fc, w_proj, b_proj)

    # Weights packed ONCE and reused across calls (hoisted, per review).
    params_f32 = pack_mlp_params(w_fc, b_fc, w_proj, b_proj,
                                 storage_dtype=jnp.float32)
    params_bf16 = pack_mlp_params(w_fc, b_fc, w_proj, b_proj)   # bf16 default

    # 1) f32 storage + exact erf GELU: tight check vs PyTorch-equivalent ref.
    y = mlp_forward_packed(x, params_f32)
    jax.block_until_ready(y)
    assert y.shape == (B, T, C)
    assert jnp.allclose(y, y_ref, atol=1e-5, rtol=1e-5), "f32 mismatch vs reference"

    # 2) Default production config: bf16 storage, f32 accumulation.
    y_bf = mlp_forward_packed(x, params_bf16)
    jax.block_until_ready(y_bf)
    assert float(jnp.max(jnp.abs(y_bf.astype(jnp.float32) - y_ref))) < 1e-1, \
        "bf16-storage mismatch vs reference"

    # 3) tanh/EUP GELU fast path (review-recommended on v6e/v7x).
    y_tanh = mlp_forward_packed(x, params_f32, approx_gelu=True)
    jax.block_until_ready(y_tanh)
    assert float(jnp.max(jnp.abs(y_tanh - y_ref))) < 5e-2, \
        "tanh-gelu mismatch vs reference"

    # 4) Ragged, non-tile-aligned M with an explicit small tile: exercises the
    #    multi-step grid + padded tail.
    x_big = jax.random.normal(k_x2, (4, 300, C), dtype=jnp.float32)
    y_big = mlp_forward_packed(x_big, params_f32, tm=512)
    jax.block_until_ready(y_big)
    y_big_ref = mlp_reference(x_big, w_fc, b_fc, w_proj, b_proj)
    assert jnp.allclose(y_big, y_big_ref, atol=1e-4, rtol=1e-4), \
        "multi-tile mismatch vs reference"

    # 5) Large M with auto tiling: exercises the big-tile / even-step
    #    (megacore-friendly) tile selection at the bf16 default.
    x_huge = jax.random.normal(k_x3, (8, 1024, C), dtype=jnp.float32)
    y_huge = mlp_forward_packed(x_huge, params_bf16)
    jax.block_until_ready(y_huge)
    y_huge_ref = mlp_reference(x_huge, w_fc, b_fc, w_proj, b_proj)
    assert float(jnp.max(jnp.abs(y_huge.astype(jnp.float32) - y_huge_ref))) < 2e-1, \
        "large-M mismatch vs reference"

    print("KERNEL_OK")
</pallas_src>

<mosaic_0001>
module attributes {stable_mosaic.version = 11 : i64} {
  func.func @_mlp_kernel(%arg0: i32, %arg1: memref<8x128xf32, #tpu.memory_space<vmem>>, %arg2: memref<128x256xf32, #tpu.memory_space<vmem>>, %arg3: memref<1x256xf32, #tpu.memory_space<vmem>>, %arg4: memref<256x128xf32, #tpu.memory_space<vmem>>, %arg5: memref<1x128xf32, #tpu.memory_space<vmem>>, %arg6: memref<8x128xf32, #tpu.memory_space<vmem>>) attributes {dimension_semantics = [#tpu.dimension_semantics<parallel>], iteration_bounds = array<i64: 1>, scalar_prefetch = 0 : i64, scratch_operands = 0 : i64, tpu.core_type = #tpu.core_type<tc>, window_params = [{transform_indices = @transform_0, window_bounds = array<i64: 8, 128>}, {pipeline_mode = #tpu.pipeline_mode<synchronous>, transform_indices = @transform_1, window_bounds = array<i64: 128, 256>}, {pipeline_mode = #tpu.pipeline_mode<synchronous>, transform_indices = @transform_2, window_bounds = array<i64: 1, 256>}, {pipeline_mode = #tpu.pipeline_mode<synchronous>, transform_indices = @transform_3, window_bounds = array<i64: 256, 128>}, {pipeline_mode = #tpu.pipeline_mode<synchronous>, transform_indices = @transform_4, window_bounds = array<i64: 1, 128>}, {transform_indices = @transform_5, window_bounds = array<i64: 8, 128>}]} {
    %c0 = arith.constant 0 : index
    %c0_0 = arith.constant 0 : index
    %0 = vector.load %arg1[%c0, %c0_0] : memref<8x128xf32, #tpu.memory_space<vmem>>, vector<8x128xf32>
    %c0_1 = arith.constant 0 : index
    %c0_2 = arith.constant 0 : index
    %1 = vector.load %arg2[%c0_1, %c0_2] : memref<128x256xf32, #tpu.memory_space<vmem>>, vector<128x256xf32>
    %cst = arith.constant dense<0.000000e+00> : vector<8x256xf32>
    %2 = tpu.matmul %0, %1, %cst {dimension_numbers = #tpu.dot_dimension_numbers<[1], [0], [0], [1], [0, 0, 1, 1], [], []>} : vector<8x128xf32>, vector<128x256xf32>, vector<8x256xf32> -> vector<8x256xf32>
    %c0_3 = arith.constant 0 : index
    %c0_4 = arith.constant 0 : index
    %3 = vector.load %arg3[%c0_3, %c0_4] : memref<1x256xf32, #tpu.memory_space<vmem>>, vector<1x256xf32>
    %4 = vector.broadcast %3 : vector<1x256xf32> to vector<8x256xf32>
    %5 = arith.addf %2, %4 : vector<8x256xf32>
    %cst_5 = arith.constant 5.000000e-01 : f32
    %6 = vector.broadcast %cst_5 : f32 to vector<8x256xf32>
    %7 = arith.mulf %6, %5 : vector<8x256xf32>
    %cst_6 = arith.constant 0.707106769 : f32
    %8 = vector.broadcast %cst_6 : f32 to vector<8x256xf32>
    %9 = arith.mulf %5, %8 : vector<8x256xf32>
    %10 = math.erf %9 : vector<8x256xf32>
    %cst_7 = arith.constant 1.000000e+00 : f32
    %11 = vector.broadcast %cst_7 : f32 to vector<8x256xf32>
    %12 = arith.addf %11, %10 : vector<8x256xf32>
    %13 = arith.mulf %7, %12 : vector<8x256xf32>
    %c0_8 = arith.constant 0 : index
    %c0_9 = arith.constant 0 : index
    %14 = vector.load %arg4[%c0_8, %c0_9] : memref<256x128xf32, #tpu.memory_space<vmem>>, vector<256x128xf32>
    %cst_10 = arith.constant dense<0.000000e+00> : vector<8x128xf32>
    %15 = tpu.matmul %13, %14, %cst_10 {dimension_numbers = #tpu.dot_dimension_numbers<[1], [0], [0], [1], [0, 0, 1, 1], [], []>} : vector<8x256xf32>, vector<256x128xf32>, vector<8x128xf32> -> vector<8x128xf32>
    %c0_11 = arith.constant 0 : index
    %c0_12 = arith.constant 0 : index
    %16 = vector.load %arg5[%c0_11, %c0_12] : memref<1x128xf32, #tpu.memory_space<vmem>>, vector<1x128xf32>
    %17 = vector.broadcast %16 : vector<1x128xf32> to vector<8x128xf32>
    %18 = arith.addf %15, %17 : vector<8x128xf32>
    %c0_13 = arith.constant 0 : index
    %c0_14 = arith.constant 0 : index
    %19 = vector.load %arg6[%c0_13, %c0_14] : memref<8x128xf32, #tpu.memory_space<vmem>>, vector<8x128xf32>
    tpu.vector_store %arg6[%c0_13, %c0_14], %18 {strides = array<i32>} : memref<8x128xf32, #tpu.memory_space<vmem>>, vector<8x128xf32>,
    return
  }
  func.func @transform_0(%arg0: i32) -> (i32, i32) {
    %c0_i32 = arith.constant 0 : i32
    %c0_i32_0 = arith.constant 0 : i32
    return %arg0, %c0_i32 : i32, i32
  }
  func.func @transform_1(%arg0: i32) -> (i32, i32) {
    %c0_i32 = arith.constant 0 : i32
    %c0_i32_0 = arith.constant 0 : i32
    %c0_i32_1 = arith.constant 0 : i32
    return %c0_i32, %c0_i32_0 : i32, i32
  }
  func.func @transform_2(%arg0: i32) -> (i32, i32) {
    %c0_i32 = arith.constant 0 : i32
    %c0_i32_0 = arith.constant 0 : i32
    %c0_i32_1 = arith.constant 0 : i32
    return %c0_i32, %c0_i32_0 : i32, i32
  }
  func.func @transform_3(%arg0: i32) -> (i32, i32) {
    %c0_i32 = arith.constant 0 : i32
    %c0_i32_0 = arith.constant 0 : i32
    %c0_i32_1 = arith.constant 0 : i32
    return %c0_i32, %c0_i32_0 : i32, i32
  }
  func.func @transform_4(%arg0: i32) -> (i32, i32) {
    %c0_i32 = arith.constant 0 : i32
    %c0_i32_0 = arith.constant 0 : i32
    %c0_i32_1 = arith.constant 0 : i32
    return %c0_i32, %c0_i32_0 : i32, i32
  }
  func.func @transform_5(%arg0: i32) -> (i32, i32) {
    %c0_i32 = arith.constant 0 : i32
    %c0_i32_0 = arith.constant 0 : i32
    return %arg0, %c0_i32 : i32, i32
  }
}

</mosaic_0001>

<llo_original>
// kernel: tpu_custom_call.1
$region0: #{tpu_custom_call.1}
  #allocation0 [shape = 'u32[]', space=smem, size = 0x4, offset = 0x4, fixed_abs, tag = 'smem constant byte address 0x4 - core index']
  #allocation1 [shape = 'u32[72,128]{1,0:T(1,128)}', space=vmem, size = 0x9000, scoped, tag = 'internal scratch']
  %s0 = inlined_call_operand.hbm [shape: f32[8,128], index: 0, kind: input, shape index: {}]
  %s1 = inlined_call_operand.hbm [shape: f32[128,256], index: 1, kind: input, shape index: {}]
  %s2 = inlined_call_operand.hbm [shape: f32[1,256], index: 2, kind: input, shape index: {}]
  %s3 = inlined_call_operand.hbm [shape: f32[256,128], index: 3, kind: input, shape index: {}]
  %s4 = inlined_call_operand.vmem [shape: f32[1,128], index: 4, kind: input, shape index: {}]
  %s5 = inlined_call_operand.hbm [shape: f32[8,128], index: 5, kind: output, shape index: {}]
  %s6 = sld [smem:[#allocation0]]
  $region46: #{tpu_custom_call.1} parent=0
    _
  %s8 = ssub.s32 1, %s6
  %s9 = scalar_select 0, %s8, %s6
  $region1: #{tpu_custom_call.1} parent=0
    #allocation2 [shape = 'u8[4096]{0}', space=vmem, size = 0x1000, scoped, tag = 'input window, operand 0, single buffered']
    #allocation3 [shape = 's32[1]{0}', space=sflag, size = 0x4, scoped, tag = 'scoped memory for tpu_custom_call.1']
    #allocation4 [shape = 's32[1]{0}', space=sflag, size = 0x4, scoped, tag = 'scoped memory for tpu_custom_call.1']
    #allocation5 [shape = 'u8[131072]{0}', space=vmem, size = 0x20000, scoped, tag = 'input window, operand 1, single buffered']
    #allocation6 [shape = 's32[1]{0}', space=sflag, size = 0x4, scoped, tag = 'scoped memory for tpu_custom_call.1']
    #allocation7 [shape = 'u8[1024]{0}', space=vmem, size = 0x400, scoped, tag = 'input window, operand 2, single buffered']
    #allocation8 [shape = 'u8[131072]{0}', space=vmem, size = 0x20000, scoped, tag = 'input window, operand 3, single buffered']
    #allocation9 [shape = 's32[1]{0}', space=sflag, size = 0x4, scoped, tag = 'scoped memory for tpu_custom_call.1']
    #allocation10 [shape = 'u8[4096]{0}', space=vmem, size = 0x1000, scoped, tag = 'output window, operand 0, single buffered']
    %10 = vsyncpa [#allocation3], 0
    %11 = vsyncpa [#allocation6], 0
    %12 = vsyncpa [#allocation9], 0
    %13 = vsyncpa [#allocation4], 0
    // Predicated region
    $region2: #{tpu_custom_call.1} parent=1 // pred_check
      _
    $region3: #{tpu_custom_call.1} parent=1 // pred_check_branch
      %15 = sbr.rel (0) target = $region5
    $region4: #{tpu_custom_call.1} parent=1 // pred_region
      %17 = vsyncadd [#allocation3], 0
      %s19 = sshll.u32 %s0, 4
      %s20 = int_to_ptr.hbm [resolvable:$true] %s19
      %s21 = sshll.u32 [#allocation2], 4
      %s22 = int_to_ptr.vmem [resolvable:$true] %s21
      %24 = dma.hbm_to_vmem [thread:$0]  %s20, 128, %s22, [#allocation3]
    $region5: #{tpu_custom_call.1} parent=1 // pred_fallthru
      _
    // Predicated region
    $region6: #{tpu_custom_call.1} parent=1 // pred_check
      _
    $region7: #{tpu_custom_call.1} parent=1 // pred_check_branch
      %26 = sbr.rel (0) target = $region9
    $region8: #{tpu_custom_call.1} parent=1 // pred_region
      %28 = vsyncadd [#allocation6], 0
      %s29 = sshll.u32 %s1, 4
      %s30 = int_to_ptr.hbm [resolvable:$true] %s29
      %s31 = sshll.u32 [#allocation5], 4
      %s32 = int_to_ptr.vmem [resolvable:$true] %s31
      %37 = dma.hbm_to_vmem [thread:$0]  %s30, 4096, %s32, [#allocation6], 256, 256, 16
    $region9: #{tpu_custom_call.1} parent=1 // pred_fallthru
      _
    // Predicated region
    $region10: #{tpu_custom_call.1} parent=1 // pred_check
      _
    $region11: #{tpu_custom_call.1} parent=1 // pred_check_branch
      %39 = sbr.rel (0) target = $region13
    $region12: #{tpu_custom_call.1} parent=1 // pred_region
      %41 = vsyncadd [#allocation6], 0
      %s43 = sshll.u32 %s2, 4
      %s44 = int_to_ptr.hbm [resolvable:$true] %s43
      %s45 = sshll.u32 [#allocation7], 4
      %s46 = int_to_ptr.vmem [resolvable:$true] %s45
      %48 = dma.hbm_to_vmem [thread:$0]  %s44, 32, %s46, [#allocation6]
    $region13: #{tpu_custom_call.1} parent=1 // pred_fallthru
      _
    // Predicated region
    $region14: #{tpu_custom_call.1} parent=1 // pred_check
      _
    $region15: #{tpu_custom_call.1} parent=1 // pred_check_branch
      %50 = sbr.rel (0) target = $region17
    $region16: #{tpu_custom_call.1} parent=1 // pred_region
      %52 = vsyncadd [#allocation9], 0
      %s53 = sshll.u32 %s3, 4
      %s54 = int_to_ptr.hbm [resolvable:$true] %s53
      %s55 = sshll.u32 [#allocation8], 4
      %s56 = int_to_ptr.vmem [resolvable:$true] %s55
      %61 = dma.hbm_to_vmem [thread:$0]  %s54, 4096, %s56, [#allocation9], 128, 128, 8
    $region17: #{tpu_custom_call.1} parent=1 // pred_fallthru
      _
    // Predicated region
    $region18: #{tpu_custom_call.1} parent=1 // pred_check
      _
    $region19: #{tpu_custom_call.1} parent=1 // pred_check_branch
      %63 = sbr.rel (0) target = $region21
    $region20: #{tpu_custom_call.1} parent=1 // pred_region
      _
    $region21: #{tpu_custom_call.1} parent=1 // pred_fallthru
      _
    // Predicated region
    $region22: #{tpu_custom_call.1} parent=1 // pred_check
      _
    $region23: #{tpu_custom_call.1} parent=1 // pred_check_branch
      %65 = sbr.rel (0) target = $region25
    $region24: #{tpu_custom_call.1} parent=1 // pred_region
      %67 = dma.done [#allocation3], 128
    $region25: #{tpu_custom_call.1} parent=1 // pred_fallthru
      _
    // Predicated region
    $region26: #{tpu_custom_call.1} parent=1 // pred_check
      _
    $region27: #{tpu_custom_call.1} parent=1 // pred_check_branch
      %69 = sbr.rel (0) target = $region29
    $region28: #{tpu_custom_call.1} parent=1 // pred_region
      %71 = dma.done [#allocation6], 4096
    $region29: #{tpu_custom_call.1} parent=1 // pred_fallthru
      _
    // Predicated region
    $region30: #{tpu_custom_call.1} parent=1 // pred_check
      _
    $region31: #{tpu_custom_call.1} parent=1 // pred_check_branch
      %73 = sbr.rel (0) target = $region33
    $region32: #{tpu_custom_call.1} parent=1 // pred_region
      %75 = dma.done [#allocation6], 32
    $region33: #{tpu_custom_call.1} parent=1 // pred_fallthru
      _
    // Predicated region
    $region34: #{tpu_custom_call.1} parent=1 // pred_check
      _
    $region35: #{tpu_custom_call.1} parent=1 // pred_check_branch
      %77 = sbr.rel (0) target = $region37
    $region36: #{tpu_custom_call.1} parent=1 // pred_region
      %79 = dma.done [#allocation9], 4096
    $region37: #{tpu_custom_call.1} parent=1 // pred_fallthru
      _
    %v80 = vld [vmem:[#allocation2] sm:$0xff]
    %v81 = vld [vmem:[#allocation5] sm:$0xff]
    %v82 = vld [vmem:[#allocation5 + $0x8] sm:$0xff]
    %v83 = vld [vmem:[#allocation5 + $0x10] sm:$0xff]
    %v84 = vld [vmem:[#allocation5 + $0x18] sm:$0xff]
    %v85 = vld [vmem:[#allocation5 + $0x20] sm:$0xff]
    %v86 = vld [vmem:[#allocation5 + $0x28] sm:$0xff]
    %v87 = vld [vmem:[#allocation5 + $0x30] sm:$0xff]
    %v88 = vld [vmem:[#allocation5 + $0x38] sm:$0xff]
    %v89 = vld [vmem:[#allocation5 + $0x40] sm:$0xff]
    %v90 = vld [vmem:[#allocation5 + $0x48] sm:$0xff]
    %v91 = vld [vmem:[#allocation5 + $0x50] sm:$0xff]
    %v92 = vld [vmem:[#allocation5 + $0x58] sm:$0xff]
    %v93 = vld [vmem:[#allocation5 + $0x60] sm:$0xff]
    %v94 = vld [vmem:[#allocation5 + $0x68] sm:$0xff]
    %v95 = vld [vmem:[#allocation5 + $0x70] sm:$0xff]
    %v96 = vld [vmem:[#allocation5 + $0x78] sm:$0xff]
    %v97 = vld [vmem:[#allocation5 + $0x80] sm:$0xff]
    %v98 = vld [vmem:[#allocation5 + $0x88] sm:$0xff]
    %v99 = vld [vmem:[#allocation5 + $0x90] sm:$0xff]
    %v100 = vld [vmem:[#allocation5 + $0x98] sm:$0xff]
    %v101 = vld [vmem:[#allocation5 + $0xa0] sm:$0xff]
    %v102 = vld [vmem:[#allocation5 + $0xa8] sm:$0xff]
    %v103 = vld [vmem:[#allocation5 + $0xb0] sm:$0xff]
    %v104 = vld [vmem:[#allocation5 + $0xb8] sm:$0xff]
    %v105 = vld [vmem:[#allocation5 + $0xc0] sm:$0xff]
    %v106 = vld [vmem:[#allocation5 + $0xc8] sm:$0xff]
    %v107 = vld [vmem:[#allocation5 + $0xd0] sm:$0xff]
    %v108 = vld [vmem:[#allocation5 + $0xd8] sm:$0xff]
    %v109 = vld [vmem:[#allocation5 + $0xe0] sm:$0xff]
    %v110 = vld [vmem:[#allocation5 + $0xe8] sm:$0xff]
    %v111 = vld [vmem:[#allocation5 + $0xf0] sm:$0xff]
    %v112 = vld [vmem:[#allocation5 + $0xf8] sm:$0xff]
    %v113 = vld [vmem:[#allocation7] sm:$0x3]
    %v115 = vperm.slane %v113, 0
    %v116 = vperm.slane %v113, 1
    %119 = vmatpush.msra.mxu0 %v111
    %120 = vmatpush.msra.mxu0 %v109
    %121 = vmatpush.msra.mxu0 %v107
    %122 = vmatpush.msra.mxu0 %v105
    %123 = vmatpush.msra.mxu0 %v103
    %124 = vmatpush.msra.mxu0 %v101
    %125 = vmatpush.msra.mxu0 %v99
    %126 = vmatpush.msra.mxu0 %v97
    %127 = vmatpush.msra.mxu0 %v95
    %128 = vmatpush.msra.mxu0 %v93
    %129 = vmatpush.msra.mxu0 %v91
    %130 = vmatpush.msra.mxu0 %v89
    %131 = vmatpush.msra.mxu0 %v87
    %132 = vmatpush.msra.mxu0 %v85
    %133 = vmatpush.msra.mxu0 %v83
    %134 = vmatpush.msra.mxu0 %v81
    %135 = vmatmul.f32.gmra.mxu0 %v80
    %v136 = vpop.f32.mrf.mxu0
    %v137 = vadd.f32 %v115, %v136
    %138 = vdwg.mxu0
    %139 = vmatpush.msra.mxu0 %v112
    %140 = vmatpush.msra.mxu0 %v110
    %141 = vmatpush.msra.mxu0 %v108
    %142 = vmatpush.msra.mxu0 %v106
    %143 = vmatpush.msra.mxu0 %v104
    %144 = vmatpush.msra.mxu0 %v102
    %145 = vmatpush.msra.mxu0 %v100
    %146 = vmatpush.msra.mxu0 %v98
    %147 = vmatpush.msra.mxu0 %v96
    %148 = vmatpush.msra.mxu0 %v94
    %149 = vmatpush.msra.mxu0 %v92
    %150 = vmatpush.msra.mxu0 %v90
    %151 = vmatpush.msra.mxu0 %v88
    %152 = vmatpush.msra.mxu0 %v86
    %153 = vmatpush.msra.mxu0 %v84
    %154 = vmatpush.msra.mxu0 %v82
    %155 = vmatmul.f32.gmra.mxu0 %v80
    %v156 = vpop.f32.mrf.mxu0
    %v157 = vadd.f32 %v116, %v156
    %158 = vdwg.mxu0
    %v159 = vmul.f32 %v137, 0.5
    %v160 = vmul.f32 %v157, 0.5
    %v161 = vmul.f32 %v137, 0.70710677
    %v162 = vmul.f32 %v157, 0.70710677
    %v163 = vmul.f32 %v161, %v161
    %v164 = vmin.f32 16.0, %v163
    %v165 = vmul.f32 %v164, 2.1237322e-06
    %v166 = vadd.f32 %v165, 0.00028619796
    %v167 = vmul.f32 %v164, %v166
    %v168 = vadd.f32 %v167, 0.0036580483
    %v169 = vmul.f32 %v164, %v168
    %v170 = vadd.f32 %v169, 0.05243302
    %v171 = vmul.f32 %v164, %v170
    %v172 = vadd.f32 %v171, 0.18741608
    %v173 = vmul.f32 %v164, %v172
    %v174 = vadd.f32 %v173, 1.1283791
    %v175 = vmul.f32 %v161, %v174
    %v176 = vmul.f32 %v164, 3.8918573e-05
    %v177 = vadd.f32 %v176, 0.001143296
    %v178 = vmul.f32 %v164, %v177
    %v179 = vadd.f32 %v178, 0.014752088
    %v180 = vmul.f32 %v164, %v179
    %v181 = vadd.f32 %v180, 0.112945676
    %v182 = vmul.f32 %v164, %v181
    %v183 = vadd.f32 %v182, 0.4994258
    %v184 = vmul.f32 %v164, %v183
    %v185 = vadd.f32 %v184, 1.0
    %v186 = vrcp.pop %v185
    %v187 = vmul.f32 %v185, %v186
    %v188 = vsub.f32 1.0, %v187
    %v189 = vmul.f32 %v186, %v188
    %v190 = vadd.f32 %v186, %v189
    %vm191 = vweird.f32 %v185
    %vm192 = vweird.f32 %v186
    %vm193 = vmor %vm191, %vm192
    %v194 = vsel %vm193, %v186, %v190
    %v195 = vand.u32 2147483647, %v185
    %vm196 = vcmp.eq.f32.partialorder %v195, 8.507059e+37
    %v197 = vand.u32 %v185, 2147483648
    %v198 = vor.u32 1.1754944e-38, %v197
    %v199 = vsel %vm196, %v198, %v194
    %v200 = vmul.f32 %v175, %v199
    %v201 = vmin.f32 %v200, 1.0
    %v202 = vmax.f32 %v201, -1.0
    %v203 = vmul.f32 %v162, %v162
    %v204 = vmin.f32 16.0, %v203
    %v205 = vmul.f32 %v204, 2.1237322e-06
    %v206 = vadd.f32 %v205, 0.00028619796
    %v207 = vmul.f32 %v204, %v206
    %v208 = vadd.f32 %v207, 0.0036580483
    %v209 = vmul.f32 %v204, %v208
    %v210 = vadd.f32 %v209, 0.05243302
    %v211 = vmul.f32 %v204, %v210
    %v212 = vadd.f32 %v211, 0.18741608
    %v213 = vmul.f32 %v204, %v212
    %v214 = vadd.f32 %v213, 1.1283791
    %v215 = vmul.f32 %v162, %v214
    %v216 = vmul.f32 %v204, 3.8918573e-05
    %v217 = vadd.f32 %v216, 0.001143296
    %v218 = vmul.f32 %v204, %v217
    %v219 = vadd.f32 %v218, 0.014752088
    %v220 = vmul.f32 %v204, %v219
    %v221 = vadd.f32 %v220, 0.112945676
    %v222 = vmul.f32 %v204, %v221
    %v223 = vadd.f32 %v222, 0.4994258
    %v224 = vmul.f32 %v204, %v223
    %v225 = vadd.f32 %v224, 1.0
    %v226 = vrcp.pop %v225
    %v227 = vmul.f32 %v225, %v226
    %v228 = vsub.f32 1.0, %v227
    %v229 = vmul.f32 %v226, %v228
    %v230 = vadd.f32 %v226, %v229
    %vm231 = vweird.f32 %v225
    %vm232 = vweird.f32 %v226
    %vm233 = vmor %vm231, %vm232
    %v234 = vsel %vm233, %v226, %v230
    %v235 = vand.u32 2147483647, %v225
    %vm236 = vcmp.eq.f32.partialorder %v235, 8.507059e+37
    %v237 = vand.u32 %v225, 2147483648
    %v238 = vor.u32 1.1754944e-38, %v237
    %v239 = vsel %vm236, %v238, %v234
    %v240 = vmul.f32 %v215, %v239
    %v241 = vmin.f32 %v240, 1.0
    %v242 = vmax.f32 %v241, -1.0
    %v243 = vadd.f32 %v202, 1.0
    %v244 = vadd.f32 %v242, 1.0
    %v245 = vmul.f32 %v159, %v243
    %v246 = vmul.f32 %v160, %v244
    %v247 = vld [vmem:[#allocation8] sm:$0xff]
    %v248 = vld [vmem:[#allocation8 + $0x8] sm:$0xff]
    %v249 = vld [vmem:[#allocation8 + $0x10] sm:$0xff]
    %v250 = vld [vmem:[#allocation8 + $0x18] sm:$0xff]
    %v251 = vld [vmem:[#allocation8 + $0x20] sm:$0xff]
    %v252 = vld [vmem:[#allocation8 + $0x28] sm:$0xff]
    %v253 = vld [vmem:[#allocation8 + $0x30] sm:$0xff]
    %v254 = vld [vmem:[#allocation8 + $0x38] sm:$0xff]
    %v255 = vld [vmem:[#allocation8 + $0x40] sm:$0xff]
    %v256 = vld [vmem:[#allocation8 + $0x48] sm:$0xff]
    %v257 = vld [vmem:[#allocation8 + $0x50] sm:$0xff]
    %v258 = vld [vmem:[#allocation8 + $0x58] sm:$0xff]
    %v259 = vld [vmem:[#allocation8 + $0x60] sm:$0xff]
    %v260 = vld [vmem:[#allocation8 + $0x68] sm:$0xff]
    %v261 = vld [vmem:[#allocation8 + $0x70] sm:$0xff]
    %v262 = vld [vmem:[#allocation8 + $0x78] sm:$0xff]
    %v263 = vld [vmem:[#allocation8 + $0x80] sm:$0xff]
    %v264 = vld [vmem:[#allocation8 + $0x88] sm:$0xff]
    %v265 = vld [vmem:[#allocation8 + $0x90] sm:$0xff]
    %v266 = vld [vmem:[#allocation8 + $0x98] sm:$0xff]
    %v267 = vld [vmem:[#allocation8 + $0xa0] sm:$0xff]
    %v268 = vld [vmem:[#allocation8 + $0xa8] sm:$0xff]
    %v269 = vld [vmem:[#allocation8 + $0xb0] sm:$0xff]
    %v270 = vld [vmem:[#allocation8 + $0xb8] sm:$0xff]
    %v271 = vld [vmem:[#allocation8 + $0xc0] sm:$0xff]
    %v272 = vld [vmem:[#allocation8 + $0xc8] sm:$0xff]
    %v273 = vld [vmem:[#allocation8 + $0xd0] sm:$0xff]
    %v274 = vld [vmem:[#allocation8 + $0xd8] sm:$0xff]
    %v275 = vld [vmem:[#allocation8 + $0xe0] sm:$0xff]
    %v276 = vld [vmem:[#allocation8 + $0xe8] sm:$0xff]
    %v277 = vld [vmem:[#allocation8 + $0xf0] sm:$0xff]
    %v278 = vld [vmem:[#allocation8 + $0xf8] sm:$0xff]
    %v279 = vld [vmem:[%s4] sm:$0x1]
    %v281 = vperm.slane %v279, 0
    %283 = vmatpush.msra.mxu0 %v262
    %284 = vmatpush.msra.mxu0 %v261
    %285 = vmatpush.msra.mxu0 %v260
    %286 = vmatpush.msra.mxu0 %v259
    %287 = vmatpush.msra.mxu0 %v258
    %288 = vmatpush.msra.mxu0 %v257
    %289 = vmatpush.msra.mxu0 %v256
    %290 = vmatpush.msra.mxu0 %v255
    %291 = vmatpush.msra.mxu0 %v254
    %292 = vmatpush.msra.mxu0 %v253
    %293 = vmatpush.msra.mxu0 %v252
    %294 = vmatpush.msra.mxu0 %v251
    %295 = vmatpush.msra.mxu0 %v250
    %296 = vmatpush.msra.mxu0 %v249
    %297 = vmatpush.msra.mxu0 %v248
    %298 = vmatpush.msra.mxu0 %v247
    %299 = vmatmul.f32.gmra.mxu0 %v245
    %v300 = vpop.f32.mrf.mxu0
    %v301 = vadd.f32 %v281, %v300
    %302 = vdwg.mxu0
    %303 = vmatpush.msra.mxu0 %v278
    %304 = vmatpush.msra.mxu0 %v277
    %305 = vmatpush.msra.mxu0 %v276
    %306 = vmatpush.msra.mxu0 %v275
    %307 = vmatpush.msra.mxu0 %v274
    %308 = vmatpush.msra.mxu0 %v273
    %309 = vmatpush.msra.mxu0 %v272
    %310 = vmatpush.msra.mxu0 %v271
    %311 = vmatpush.msra.mxu0 %v270
    %312 = vmatpush.msra.mxu0 %v269
    %313 = vmatpush.msra.mxu0 %v268
    %314 = vmatpush.msra.mxu0 %v267
    %315 = vmatpush.msra.mxu0 %v266
    %316 = vmatpush.msra.mxu0 %v265
    %317 = vmatpush.msra.mxu0 %v264
    %318 = vmatpush.msra.mxu0 %v263
    %319 = vmatmul.f32.gmra.mxu0 %v246
    %v320 = vpop.f32.mrf.mxu0
    %v321 = vadd.f32 %v301, %v320
    %322 = vdwg.mxu0
    %323 = vst [vmem:[#allocation10] sm:$0xff] %v321
    // Predicated region
    $region38: #{tpu_custom_call.1} parent=1 // pred_check
      _
    $region39: #{tpu_custom_call.1} parent=1 // pred_check_branch
      %325 = sbr.rel (0) target = $region41
    $region40: #{tpu_custom_call.1} parent=1 // pred_region
      %327 = vsyncadd [#allocation4], 0
      %s329 = sshll.u32 [#allocation10], 4
      %s330 = int_to_ptr.vmem [resolvable:$true] %s329
      %s331 = sshll.u32 %s5, 4
      %s332 = int_to_ptr.hbm [resolvable:$true] %s331
      %334 = dma.vmem_to_hbm [thread:$0]  %s330, 128, %s332, [#allocation4]
    $region41: #{tpu_custom_call.1} parent=1 // pred_fallthru
      _
    // Predicated region
    $region42: #{tpu_custom_call.1} parent=1 // pred_check
      _
    $region43: #{tpu_custom_call.1} parent=1 // pred_check_branch
      %336 = sbr.rel (0) target = $region45
    $region44: #{tpu_custom_call.1} parent=1 // pred_region
      %338 = dma.done [#allocation4], 128
    $region45: #{tpu_custom_call.1} parent=1 // pred_fallthru
      _
    %339 = vsyncpa [#allocation3], 1
    %340 = vsyncpa [#allocation6], 1
    %341 = vsyncpa [#allocation9], 1
    %342 = vsyncpa [#allocation4], 1

</llo_original>
